<compile_context>
chip_gen: v7x
topology: tpu7x:2x2x1
jax: 0.10.0
libtpu: 0.0.40
codegen_flags: <defaults>
</compile_context>

<pallas_src>
import functools

import numpy as np
import jax
import jax.numpy as jnp
from jax import lax
from jax.experimental import pallas as pl
from jax.experimental.pallas import tpu as pltpu


def _round_up(x, m):
    return (x + m - 1) // m * m


def _embed_ln_kernel(p_ref, w_ref, aff_ref, o_ref, *, eps, inv_e):
    # p_ref: (TM, K) bf16, w_ref: (K, E) bf16, aff_ref: (3, E) f32
    # o_ref: (TM, E) out_dtype
    y = jnp.dot(p_ref[...], w_ref[...], preferred_element_type=jnp.float32)
    y = y + aff_ref[0:1, :]                       # conv bias
    # Two-pass LayerNorm statistics over the embed dim (tile is VMEM-resident,
    # so the extra VPU pass is free relative to the HBM stream).
    mean = jnp.sum(y, axis=-1, keepdims=True) * inv_e
    d = y - mean
    var = jnp.sum(d * d, axis=-1, keepdims=True) * inv_e
    y_hat = d * lax.rsqrt(var + eps)
    o_ref[...] = (y_hat * aff_ref[1:2, :] + aff_ref[2:3, :]).astype(o_ref.dtype)


def _im2col_3d(x, k, stride, pad):
    """x: (B, C, H, W, D) -> (B*Ho*Wo*Do, C*k^3), feature order (c, kh, kw, kd)."""
    B, C, H, W, D = x.shape
    Ho = (H + 2 * pad - k) // stride + 1
    Wo = (W + 2 * pad - k) // stride + 1
    Do = (D + 2 * pad - k) // stride + 1
    xp = jnp.pad(x, ((0, 0), (0, 0), (pad, pad), (pad, pad), (pad, pad)))

    if (stride == k and (H + 2 * pad) == Ho * k and (W + 2 * pad) == Wo * k
            and (D + 2 * pad) == Do * k):
        # Non-overlapping windows (module default: patch_size == stride == 2):
        # im2col is a pure pad + space-to-depth, i.e. one transpose copy.
        xr = xp.reshape(B, C, Ho, k, Wo, k, Do, k)
        pat = jnp.transpose(xr, (0, 2, 4, 6, 1, 3, 5, 7))  # (B,Ho,Wo,Do,C,k,k,k)
        return pat.reshape(B * Ho * Wo * Do, C * k * k * k), (Ho, Wo, Do)

    # TODO(synk): for stride < k (overlapping windows), fuse the tap gather into
    # the kernel via a trailing 'arbitrary' tap grid axis + f32 VMEM accumulator
    # so the k^3-expanded patch matrix never round-trips HBM.
    slabs = []
    for kh in range(k):
        for kw in range(k):
            for kd in range(k):
                slabs.append(
                    xp[:, :,
                       kh:kh + stride * Ho:stride,
                       kw:kw + stride * Wo:stride,
                       kd:kd + stride * Do:stride])
    pat = jnp.stack(slabs, axis=0)                    # (k^3, B, C, Ho, Wo, Do)
    pat = jnp.transpose(pat, (1, 3, 4, 5, 2, 0))      # (B, Ho, Wo, Do, C, k^3)
    return pat.reshape(B * Ho * Wo * Do, C * k * k * k), (Ho, Wo, Do)


def overlap_patch_embed(x, conv_w, conv_b, ln_g, ln_b, *, stride=2, pad=1,
                        eps=1e-5, tile_m=1024, min_tiles=4,
                        out_dtype=jnp.bfloat16):
    """Forward pass of OverlapPatchEmbed.

    x:      (B, C, H, W, D)   float32
    conv_w: (E, C, k, k, k)   float32  (PyTorch Conv3d layout)
    conv_b: (E,)              float32
    ln_g, ln_b: (E,)          float32
    Returns (out, Ho, Wo, Do) with out of shape (B, N, E), N = Ho*Wo*Do.
    """
    B = x.shape[0]
    E, C, k, _, _ = conv_w.shape

    patches, (Ho, Wo, Do) = _im2col_3d(x.astype(jnp.bfloat16), k, stride, pad)
    M, K = patches.shape

    # Tile M. Cap TM so the grid has at least `min_tiles` programs (keeps both
    # v7x TensorCores busy via the "parallel" axis); round to a multiple of 16
    # to avoid bf16 sublane-pack padding. Padded zero rows produce
    # LayerNorm(bias) and are sliced off afterwards (do not feed them to a
    # fused consumer before the slice).
    TM = max(16, min(tile_m, _round_up(-(-M // min_tiles), 16)))
    M_pad = _round_up(M, TM)
    if M_pad != M:
        patches = jnp.pad(patches, ((0, M_pad - M), (0, 0)))

    # TODO(synk): for later stages with large K (= C*k^3 >= 256), add a K grid
    # axis (last, 'arbitrary') with a f32 VMEM accumulator instead of loading
    # the full (TM, K) patch block and (K, E) weight per step.
    w_flat = conv_w.reshape(E, K).T.astype(jnp.bfloat16)   # (K, E), order (c,kh,kw,kd)
    affine = jnp.stack(
        [conv_b.astype(jnp.float32),
         ln_g.astype(jnp.float32),
         ln_b.astype(jnp.float32)], axis=0)                 # (3, E) resident

    grid = (M_pad // TM,)
    out_bytes = np.dtype(out_dtype).itemsize
    cost = pl.CostEstimate(
        flops=2 * M_pad * K * E + 5 * M_pad * E,
        transcendentals=M_pad,
        bytes_accessed=(M_pad * K * 2 + K * E * 2 + 3 * E * 4
                        + M_pad * E * out_bytes))

    out = pl.pallas_call(
        functools.partial(_embed_ln_kernel, eps=eps, inv_e=1.0 / E),
        out_shape=jax.ShapeDtypeStruct((M_pad, E), out_dtype),
        grid=grid,
        in_specs=[
            pl.BlockSpec((TM, K), lambda i: (i, 0)),     # streamed + double-buffered
            pl.BlockSpec((K, E), lambda i: (0, 0)),      # VMEM-resident weights
            pl.BlockSpec((3, E), lambda i: (0, 0)),      # fused bias/gamma/beta
        ],
        out_specs=pl.BlockSpec((TM, E), lambda i: (i, 0)),
        compiler_params=pltpu.CompilerParams(
            dimension_semantics=("parallel",)),
        cost_estimate=cost,
    )(patches, w_flat, affine)

    out = out[:M].reshape(B, Ho * Wo * Do, E)
    return out, Ho, Wo, Do


def _reference(x, conv_w, conv_b, ln_g, ln_b, *, stride=2, pad=1, eps=1e-5):
    # Reference with the same bf16 input/weight quantization as the kernel path.
    xq = x.astype(jnp.bfloat16).astype(jnp.float32)
    wq = conv_w.astype(jnp.bfloat16).astype(jnp.float32)
    dn = lax.conv_dimension_numbers(xq.shape, wq.shape, ("NCHWD", "OIHWD", "NCHWD"))
    y = lax.conv_general_dilated(
        xq, wq, window_strides=(stride,) * 3,
        padding=[(pad, pad)] * 3, dimension_numbers=dn)
    y = y + conv_b.reshape(1, -1, 1, 1, 1)
    B, E, Ho, Wo, Do = y.shape
    y = y.reshape(B, E, Ho * Wo * Do).transpose(0, 2, 1)      # (B, N, E)
    mean = jnp.mean(y, axis=-1, keepdims=True)
    var = jnp.mean(jnp.square(y - mean), axis=-1, keepdims=True)
    y = (y - mean) * lax.rsqrt(var + eps) * ln_g + ln_b
    return y, Ho, Wo, Do


if __name__ == "__main__":
    key = jax.random.PRNGKey(0)
    kx, kw, kb = jax.random.split(key, 3)

    # Small shapes consistent with the module defaults:
    # patch_size=2, stride=2, padding=1, in_chans=3, embed_dim=128
    B, C, H, W, D = 2, 3, 8, 8, 8
    E, k = 128, 2

    x = jax.random.normal(kx, (B, C, H, W, D), dtype=jnp.float32)

    fan_in = float(C * k * k * k)
    conv_w = jax.random.normal(kw, (E, C, k, k, k), dtype=jnp.float32) * (
        1.0 / jnp.sqrt(fan_in))
    conv_b = jax.random.normal(kb, (E,), dtype=jnp.float32) * 0.01
    ln_g = jnp.ones((E,), dtype=jnp.float32)
    ln_b = jnp.zeros((E,), dtype=jnp.float32)

    out, Ho, Wo, Do = overlap_patch_embed(x, conv_w, conv_b, ln_g, ln_b)
    out = jax.block_until_ready(out)

    ref, rHo, rWo, rDo = _reference(x, conv_w, conv_b, ln_g, ln_b)
    assert (Ho, Wo, Do) == (rHo, rWo, rDo)
    assert out.shape == (B, Ho * Wo * Do, E)
    assert out.dtype == jnp.bfloat16

    err = float(jnp.max(jnp.abs(out.astype(jnp.float32) - ref)))
    assert err < 2e-2, f"max abs err {err}"

    print("KERNEL_OK")
</pallas_src>

<mosaic_0001>
module attributes {stable_mosaic.version = 11 : i64} {
  func.func @_embed_ln_kernel(%arg0: i32, %arg1: memref<64x24xbf16, #tpu.memory_space<vmem>>, %arg2: memref<24x128xbf16, #tpu.memory_space<vmem>>, %arg3: memref<3x128xf32, #tpu.memory_space<vmem>>, %arg4: memref<64x128xbf16, #tpu.memory_space<vmem>>) attributes {dimension_semantics = [#tpu.dimension_semantics<parallel>], iteration_bounds = array<i64: 4>, scalar_prefetch = 0 : i64, scratch_operands = 0 : i64, tpu.core_type = #tpu.core_type<tc>, window_params = [{transform_indices = @transform_0, window_bounds = array<i64: 64, 24>}, {pipeline_mode = #tpu.pipeline_mode<synchronous>, transform_indices = @transform_1, window_bounds = array<i64: 24, 128>}, {pipeline_mode = #tpu.pipeline_mode<synchronous>, transform_indices = @transform_2, window_bounds = array<i64: 3, 128>}, {transform_indices = @transform_3, window_bounds = array<i64: 64, 128>}]} {
    %c0 = arith.constant 0 : index
    %c0_0 = arith.constant 0 : index
    %0 = vector.load %arg1[%c0, %c0_0] : memref<64x24xbf16, #tpu.memory_space<vmem>>, vector<64x24xbf16>
    %c0_1 = arith.constant 0 : index
    %c0_2 = arith.constant 0 : index
    %1 = vector.load %arg2[%c0_1, %c0_2] : memref<24x128xbf16, #tpu.memory_space<vmem>>, vector<24x128xbf16>
    %cst = arith.constant dense<0.000000e+00> : vector<64x128xf32>
    %2 = tpu.matmul %0, %1, %cst {dimension_numbers = #tpu.dot_dimension_numbers<[1], [0], [0], [1], [0, 0, 1, 1], [], []>} : vector<64x24xbf16>, vector<24x128xbf16>, vector<64x128xf32> -> vector<64x128xf32>
    %c0_3 = arith.constant 0 : index
    %c0_4 = arith.constant 0 : index
    %3 = vector.load %arg3[%c0_3, %c0_4] : memref<3x128xf32, #tpu.memory_space<vmem>>, vector<1x128xf32>
    %4 = vector.broadcast %3 : vector<1x128xf32> to vector<64x128xf32>
    %5 = arith.addf %2, %4 : vector<64x128xf32>
    %cst_5 = arith.constant dense<0.000000e+00> : vector<64xf32>
    %6 = vector.multi_reduction <add>, %5, %cst_5 [1] : vector<64x128xf32> to vector<64xf32>
    %7 = vector.shape_cast %6 : vector<64xf32> to vector<64x1xf32>
    %cst_6 = arith.constant 7.812500e-03 : f32
    %8 = vector.broadcast %cst_6 : f32 to vector<64x1xf32>
    %9 = arith.mulf %7, %8 : vector<64x1xf32>
    %10 = vector.broadcast %9 : vector<64x1xf32> to vector<64x128xf32>
    %11 = arith.subf %5, %10 : vector<64x128xf32>
    %12 = arith.mulf %11, %11 : vector<64x128xf32>
    %cst_7 = arith.constant dense<0.000000e+00> : vector<64xf32>
    %13 = vector.multi_reduction <add>, %12, %cst_7 [1] : vector<64x128xf32> to vector<64xf32>
    %14 = vector.shape_cast %13 : vector<64xf32> to vector<64x1xf32>
    %cst_8 = arith.constant 7.812500e-03 : f32
    %15 = vector.broadcast %cst_8 : f32 to vector<64x1xf32>
    %16 = arith.mulf %14, %15 : vector<64x1xf32>
    %cst_9 = arith.constant 9.99999974E-6 : f32
    %17 = vector.broadcast %cst_9 : f32 to vector<64x1xf32>
    %18 = arith.addf %16, %17 : vector<64x1xf32>
    %19 = math.rsqrt %18 : vector<64x1xf32>
    %20 = vector.broadcast %19 : vector<64x1xf32> to vector<64x128xf32>
    %21 = arith.mulf %11, %20 : vector<64x128xf32>
    %c1 = arith.constant 1 : index
    %c0_10 = arith.constant 0 : index
    %22 = vector.load %arg3[%c1, %c0_10] : memref<3x128xf32, #tpu.memory_space<vmem>>, vector<1x128xf32>
    %23 = vector.broadcast %22 : vector<1x128xf32> to vector<64x128xf32>
    %24 = arith.mulf %21, %23 : vector<64x128xf32>
    %c2 = arith.constant 2 : index
    %c0_11 = arith.constant 0 : index
    %25 = vector.load %arg3[%c2, %c0_11] : memref<3x128xf32, #tpu.memory_space<vmem>>, vector<1x128xf32>
    %26 = vector.broadcast %25 : vector<1x128xf32> to vector<64x128xf32>
    %27 = arith.addf %24, %26 : vector<64x128xf32>
    %28 = arith.truncf %27 : vector<64x128xf32> to vector<64x128xbf16>
    %c0_12 = arith.constant 0 : index
    %c0_13 = arith.constant 0 : index
    %29 = vector.load %arg4[%c0_12, %c0_13] : memref<64x128xbf16, #tpu.memory_space<vmem>>, vector<64x128xbf16>
    tpu.vector_store %arg4[%c0_12, %c0_13], %28 {strides = array<i32>} : memref<64x128xbf16, #tpu.memory_space<vmem>>, vector<64x128xbf16>,
    return
  }
  func.func @transform_0(%arg0: i32) -> (i32, i32) {
    %c0_i32 = arith.constant 0 : i32
    %c0_i32_0 = arith.constant 0 : i32
    return %arg0, %c0_i32 : i32, i32
  }
  func.func @transform_1(%arg0: i32) -> (i32, i32) {
    %c0_i32 = arith.constant 0 : i32
    %c0_i32_0 = arith.constant 0 : i32
    %c0_i32_1 = arith.constant 0 : i32
    return %c0_i32, %c0_i32_0 : i32, i32
  }
  func.func @transform_2(%arg0: i32) -> (i32, i32) {
    %c0_i32 = arith.constant 0 : i32
    %c0_i32_0 = arith.constant 0 : i32
    %c0_i32_1 = arith.constant 0 : i32
    return %c0_i32, %c0_i32_0 : i32, i32
  }
  func.func @transform_3(%arg0: i32) -> (i32, i32) {
    %c0_i32 = arith.constant 0 : i32
    %c0_i32_0 = arith.constant 0 : i32
    return %arg0, %c0_i32 : i32, i32
  }
}

</mosaic_0001>

<llo_original>
// kernel: tpu_custom_call.1
$region0: #{tpu_custom_call.1}
  #allocation0 [shape = 'u32[]', space=smem, size = 0x4, offset = 0x4, fixed_abs, tag = 'smem constant byte address 0x4 - core index']
  #allocation1 [shape = 'u32[144,128]{1,0:T(1,128)}', space=vmem, size = 0x12000, scoped, tag = 'internal scratch']
  %s0 = inlined_call_operand.vmem [shape: bf16[256,24], index: 0, kind: input, shape index: {}]
  %s1 = inlined_call_operand.vmem [shape: bf16[24,128], index: 1, kind: input, shape index: {}]
  %s2 = inlined_call_operand.vmem [shape: f32[3,128], index: 2, kind: input, shape index: {}]
  %s3 = inlined_call_operand.hbm [shape: bf16[256,128], index: 3, kind: output, shape index: {}]
  %s4 = sld [smem:[#allocation0]]
  $region45: #{tpu_custom_call.1} parent=0
    _
  %s6 = ssub.s32 1, %s4
  %s7 = scalar_select 0, %s6, %s4
  $region1: #{tpu_custom_call.1} parent=0
    #allocation2 [shape = 'u8[32768]{0}', space=vmem, size = 0x8000, scoped, tag = 'output window, operand 0']
    #allocation3 [shape = 's32[2]{0}', space=sflag, size = 0x8, scoped, tag = 'scoped memory for tpu_custom_call.1']
    %8 = vsyncpa [#allocation3], 0
    %s9 = scalar_lea.sflag [#allocation3], 1
    %10 = vsyncpa %s9, 0
    loop: start=0, step=1, limit=6
    $region2: #{tpu_custom_call.1} parent=1 // loop_pre_header
      _
    $region3: #{tpu_custom_call.1} parent=1 // loop_header
      %s12 = sphi 0, %s16
      %p13 = scmp.ge.s32.totalorder %s12, 6
      %s22 = sphi 0, %s24
      %s25 = sphi 0, %s22
      %s26 = sphi 0, %s25
      %s42 = sphi 0, %s26
      %s46 = sphi 0, %s46
      %s48 = sphi 0, %s46
      %s49 = sphi 0, %s48
      %s63 = sphi 0, %s49
      %s67 = sphi 0, %s67
      %s69 = sphi 0, %s67
      %s70 = sphi 0, %s69
      %s84 = sphi 0, %s70
      %s90 = sphi 0, %s92
      %s93 = sphi 0, %s90
      %s94 = sphi 0, %s93
      %s110 = sphi 0, %s94
    $region4: #{tpu_custom_call.1} parent=1 // loop_header_branch
      %15 = sbr.rel (%p13) target = $region8
    $region5: #{tpu_custom_call.1} parent=1 // loop_body
      %s17 = ssub.s32 %s12, 1
      %s18 = ssub.s32 %s12, 2
      %s19 = sadd.s32 %s12, 1
      %s20 = ssub.s32 %s12, %s19
      %p21 = scmp.eq.s32.totalorder %s20, 0
      %s23 = sadd.s32 %s22, 1
      %s24 = scalar_select %p21, %s22, %s23
      %p27 = pneg %p21
      %p28 = scmp.eq.s32.totalorder %s12, 3
      %p29 = por %p27, %p28
      %p30 = scmp.ne.s32.totalorder %s22, %s25
      %p31 = scmp.eq.s32.totalorder %s12, 0
      %p32 = por %p30, %p31
      %p33 = scmp.ne.s32.totalorder %s22, %s25
      %p34 = scmp.eq.s32.totalorder %s17, 3
      %p35 = por %p33, %p34
      %p36 = scmp.ne.s32.totalorder %s25, %s26
      %p37 = scmp.eq.s32.totalorder %s17, 0
      %p38 = por %p36, %p37
      %p39 = scmp.ne.s32.totalorder %s25, %s26
      %p40 = scmp.eq.s32.totalorder %s18, 3
      %p41 = por %p39, %p40
      %p43 = scmp.ne.s32.totalorder %s26, %s42
      %p44 = scmp.eq.s32.totalorder %s18, 0
      %p45 = por %p43, %p44
      %s47 = sadd.s32 %s46, 1
      %p50 = scmp.eq.s32.totalorder %s12, 3
      %p51 = scmp.ne.s32.totalorder %s46, %s48
      %p52 = scmp.eq.s32.totalorder %s12, 0
      %p53 = por %p51, %p52
      %p54 = scmp.ne.s32.totalorder %s46, %s48
      %p55 = scmp.eq.s32.totalorder %s17, 3
      %p56 = por %p54, %p55
      %p57 = scmp.ne.s32.totalorder %s48, %s49
      %p58 = scmp.eq.s32.totalorder %s17, 0
      %p59 = por %p57, %p58
      %p60 = scmp.ne.s32.totalorder %s48, %s49
      %p61 = scmp.eq.s32.totalorder %s18, 3
      %p62 = por %p60, %p61
      %p64 = scmp.ne.s32.totalorder %s49, %s63
      %p65 = scmp.eq.s32.totalorder %s18, 0
      %p66 = por %p64, %p65
      %s68 = sadd.s32 %s67, 1
      %p71 = scmp.eq.s32.totalorder %s12, 3
      %p72 = scmp.ne.s32.totalorder %s67, %s69
      %p73 = scmp.eq.s32.totalorder %s12, 0
      %p74 = por %p72, %p73
      %p75 = scmp.ne.s32.totalorder %s67, %s69
      %p76 = scmp.eq.s32.totalorder %s17, 3
      %p77 = por %p75, %p76
      %p78 = scmp.ne.s32.totalorder %s69, %s70
      %p79 = scmp.eq.s32.totalorder %s17, 0
      %p80 = por %p78, %p79
      %p81 = scmp.ne.s32.totalorder %s69, %s70
      %p82 = scmp.eq.s32.totalorder %s18, 3
      %p83 = por %p81, %p82
      %p85 = scmp.ne.s32.totalorder %s70, %s84
      %p86 = scmp.eq.s32.totalorder %s18, 0
      %p87 = por %p85, %p86
      %s88 = ssub.s32 %s12, %s19
      %p89 = scmp.eq.s32.totalorder %s88, 0
      %s91 = sadd.s32 %s90, 1
      %s92 = scalar_select %p89, %s90, %s91
      %p95 = pneg %p89
      %p96 = scmp.eq.s32.totalorder %s12, 3
      %p97 = por %p95, %p96
      %p98 = scmp.ne.s32.totalorder %s90, %s93
      %p99 = scmp.eq.s32.totalorder %s12, 0
      %p100 = por %p98, %p99
      %p101 = scmp.ne.s32.totalorder %s90, %s93
      %p102 = scmp.eq.s32.totalorder %s17, 3
      %p103 = por %p101, %p102
      %p104 = scmp.ne.s32.totalorder %s93, %s94
      %p105 = scmp.eq.s32.totalorder %s17, 0
      %p106 = por %p104, %p105
      %p107 = scmp.ne.s32.totalorder %s93, %s94
      %p108 = scmp.eq.s32.totalorder %s18, 3
      %p109 = por %p107, %p108
      %p111 = scmp.ne.s32.totalorder %s94, %s110
      %p112 = scmp.eq.s32.totalorder %s18, 0
      %p113 = por %p111, %p112
      %p114 = scmp.le.s32.totalorder 1, %s12
      %p115 = scmp.lt.s32.totalorder %s12, 5
      %p116 = pnand %p114, %p115
      %p117 = pneg %p116
      // Predicated region
      $region9: #{tpu_custom_call.1} parent=5 // pred_check
        _
      $region10: #{tpu_custom_call.1} parent=5 // pred_check_branch
        %119 = sbr.rel (%p116) target = $region12
      $region11: #{tpu_custom_call.1} parent=5 // pred_region
        %s120 = ssub.s32 %s12, 1
        // Predicated region
        $region13: #{tpu_custom_call.1} parent=11 // pred_check
          %p121 = pneg %p59
        $region14: #{tpu_custom_call.1} parent=11 // pred_check_branch
          %123 = sbr.rel (%p121) target = $region16
        $region15: #{tpu_custom_call.1} parent=11 // pred_region
          _
        $region16: #{tpu_custom_call.1} parent=11 // pred_fallthru
          _
        // Predicated region
        $region17: #{tpu_custom_call.1} parent=11 // pred_check
          %p124 = pneg %p80
        $region18: #{tpu_custom_call.1} parent=11 // pred_check_branch
          %126 = sbr.rel (%p124) target = $region20
        $region19: #{tpu_custom_call.1} parent=11 // pred_region
          _
        $region20: #{tpu_custom_call.1} parent=11 // pred_fallthru
          _
      $region12: #{tpu_custom_call.1} parent=5 // pred_fallthru
        _
      %p127 = scmp.lt.s32.totalorder %s12, 4
      // Predicated region
      $region21: #{tpu_custom_call.1} parent=5 // pred_check
        %p128 = pneg %p127
      $region22: #{tpu_custom_call.1} parent=5 // pred_check_branch
        %130 = sbr.rel (%p128) target = $region24
      $region23: #{tpu_custom_call.1} parent=5 // pred_region
        // Predicated region
        $region25: #{tpu_custom_call.1} parent=23 // pred_check
          %p131 = pneg %p32
        $region26: #{tpu_custom_call.1} parent=23 // pred_check_branch
          %133 = sbr.rel (%p131) target = $region28
        $region27: #{tpu_custom_call.1} parent=23 // pred_region
          %s134 = smul.u32 8, %s12
          %p135 = scmp.lt.s32.totalorder %s134, 31
          %s136 = scalar_select %p135, %s134, 31
          %s137 = smul.addr %s136, 4
          %s138 = scalar_lea.vmem %s0, %s137
          %s139 = smul.u32 8, %s12
        $region28: #{tpu_custom_call.1} parent=23 // pred_fallthru
          _
      $region24: #{tpu_custom_call.1} parent=5 // pred_fallthru
        _
      %p140 = scmp.le.s32.totalorder 1, %s12
      %p141 = scmp.lt.s32.totalorder %s12, 5
      %p142 = pnand %p140, %p141
      %p143 = pneg %p142
      // Predicated region
      $region29: #{tpu_custom_call.1} parent=5 // pred_check
        _
      $region30: #{tpu_custom_call.1} parent=5 // pred_check_branch
        %145 = sbr.rel (%p142) target = $region32
      $region31: #{tpu_custom_call.1} parent=5 // pred_region
        %s146 = ssub.s32 %s12, 1
        %s147 = smul.u32 8, %s17
        %p148 = scmp.lt.s32.totalorder %s147, 31
        %s149 = scalar_select %p148, %s147, 31
        %s150 = smul.addr %s149, 4
        %s151 = scalar_lea.vmem %s0, %s150
        %p152 = pneg %p38
        %p153 = pneg %p35
        %p154 = pneg %p59
        %p155 = pneg %p56
        %p156 = pneg %p80
        %p157 = pneg %p77
        %p158 = pneg %p106
        %p159 = pneg %p103
        %s160 = sand.u32 %s93, 1
        %s161 = scalar_lea.sflag [#allocation3], %s160
        %s162 = sand.u32 %s93, 1
        %s163 = smul.addr %s162, 32
        %s164 = scalar_lea.vmem [#allocation2], %s163
        %s165 = smul.u32 8, %s17
        %p166 = scmp.lt.s32.totalorder %s165, 31
        %s167 = scalar_select %p166, %s165, 31
        %s168 = smul.addr %s167, 4
        %s169 = scalar_lea.vmem %s0, %s168
        %s170 = smul.u32 8, %s17
        %s171 = smul.u32 8, %s17
        %v173 = vld [vmem:[%s169] sm:$0xf]
        %v174 = vld [vmem:[%s169 + $0x4] sm:$0xf]
        %v175 = vld [vmem:[%s169 + $0x8] sm:$0xf]
        %v176 = vld [vmem:[%s169 + $0xc] sm:$0xf]
        %v177 = vld [vmem:[%s169 + $0x10] sm:$0xf]
        %v178 = vld [vmem:[%s169 + $0x14] sm:$0xf]
        %v179 = vld [vmem:[%s169 + $0x18] sm:$0xf]
        %v180 = vld [vmem:[%s169 + $0x1c] sm:$0xf]
        %v181 = vld [vmem:[%s1] sm:$0xf]
        %v182 = vld [vmem:[%s1 + $0x4] sm:$0xf]
        %v183 = vld [vmem:[%s1 + $0x8] sm:$0xf]
        %v184 = vld [vmem:[%s2] sm:$0x1]
        %v185 = vlaneseq
        %v186 = vshrl.u32 %v185, 7
        %v187 = vsub.s32 0, %v186
        %v188 = vrot.slane %v184, %v187
        %v197 = vunpack.c.l.b16 %v173
        %v198 = vunpack.c.l.b16 %v174
        %v199 = vunpack.c.l.b16 %v175
        %v200 = vunpack.c.l.b16 %v176
        %v201 = vunpack.c.l.b16 %v177
        %v202 = vunpack.c.l.b16 %v178
        %v203 = vunpack.c.l.b16 %v179
        %v204 = vunpack.c.l.b16 %v180
        %v205 = vpack.c.b16 %v198, %v197
        %v206 = vpack.c.b16 %v200, %v199
        %v207 = vpack.c.b16 %v202, %v201
        %v208 = vpack.c.b16 %v204, %v203
        %v212 = vunpack.c.l.b16 %v181
        %v213 = vunpack.c.l.b16 %v182
        %v214 = vunpack.c.l.b16 %v183
        %v215 = vpack.c.b16 %v213, %v212
        %v216 = vpack.c.b16 %v214, %v214
        %vm218 = vcmask 195584
        %v220 = vsel %vm218, %v205, 0
        %v223 = vsel %vm218, %v206, 0
        %v226 = vsel %vm218, %v207, 0
        %v229 = vsel %vm218, %v208, 0
        %vm231 = vcmask 1043456
        %v233 = vsel %vm231, %v216, 0
        %235 = vmatprep.subr.bf16.mxu0 0
        %236 = vmatpush1.bf16.msra.mxu0 %v215
        %237 = vmatprep.subr.bf16.mxu0 0
        %238 = vmatpush1.bf16.msra.mxu0 %v233
        %239 = vmatprep.subr.bf16.mxu0 0
        %240 = vmatpush1.bf16.msra.mxu0 0
        %241 = vmatprep.subr.bf16.mxu0 0
        %242 = vmatpush1.bf16.msra.mxu0 0
        %243 = vmatprep.subr.bf16.mxu0 0
        %244 = vmatpush1.bf16.msra.mxu0 0
        %245 = vmatprep.subr.bf16.mxu0 0
        %246 = vmatpush1.bf16.msra.mxu0 0
        %247 = vmatprep.subr.bf16.mxu0 0
        %248 = vmatpush1.bf16.msra.mxu0 0
        %249 = vmatprep.subr.bf16.mxu0 0
        %250 = vmatpush1.bf16.msra.mxu0 0
        %251 = vmatprep.subr.bf16.mxu0 0
        %252 = vmatpush1.bf16.msra.mxu0 0
        %253 = vmatprep.subr.bf16.mxu0 0
        %254 = vmatpush1.bf16.msra.mxu0 0
        %255 = vmatprep.subr.bf16.mxu0 0
        %256 = vmatpush1.bf16.msra.mxu0 0
        %257 = vmatprep.subr.bf16.mxu0 0
        %258 = vmatpush1.bf16.msra.mxu0 0
        %259 = vmatprep.subr.bf16.mxu0 0
        %260 = vmatpush1.bf16.msra.mxu0 0
        %261 = vmatprep.subr.bf16.mxu0 0
        %262 = vmatpush1.bf16.msra.mxu0 0
        %263 = vmatprep.subr.bf16.mxu0 0
        %264 = vmatpush1.bf16.msra.mxu0 0
        %265 = vmatprep.subr.bf16.mxu0 0
        %266 = vmatpush1.bf16.msra.mxu0 0
        %267 = vmatprep.mubr.bf16.mxu0 0
        %268 = vmatmul.mubr.bf16.gmra.mrb[0].mxu0 %v220
        %v269 = vpop.f32.mrb[0].mxu0
        %v270 = vadd.f32 %v188, %v269
        %v271 = vpop.f32.mrb[0].mxu0
        %v272 = vpop.f32.mrb[0].mxu0
        %v273 = vadd.f32 %v188, %v272
        %v274 = vpop.f32.mrb[0].mxu0
        %275 = vmatprep.mubr.bf16.mxu0 0
        %276 = vmatmul.mubr.bf16.gmra.mrb[0].mxu0 %v223
        %v277 = vpop.f32.mrb[0].mxu0
        %v278 = vadd.f32 %v188, %v277
        %v279 = vpop.f32.mrb[0].mxu0
        %v280 = vpop.f32.mrb[0].mxu0
        %v281 = vadd.f32 %v188, %v280
        %v282 = vpop.f32.mrb[0].mxu0
        %283 = vmatprep.mubr.bf16.mxu0 0
        %284 = vmatmul.mubr.bf16.gmra.mrb[0].mxu0 %v226
        %v285 = vpop.f32.mrb[0].mxu0
        %v286 = vadd.f32 %v188, %v285
        %v287 = vpop.f32.mrb[0].mxu0
        %v288 = vpop.f32.mrb[0].mxu0
        %v289 = vadd.f32 %v188, %v288
        %v290 = vpop.f32.mrb[0].mxu0
        %291 = vmatprep.mubr.bf16.mxu0 0
        %292 = vmatmul.mubr.bf16.gmra.mrb[0].mxu0 %v229
        %v293 = vpop.f32.mrb[0].mxu0
        %v294 = vadd.f32 %v188, %v293
        %v295 = vpop.f32.mrb[0].mxu0
        %v296 = vpop.f32.mrb[0].mxu0
        %v297 = vadd.f32 %v188, %v296
        %v298 = vpop.f32.mrb[0].mxu0
        %299 = vdwg.mxu0
        %300 = vadd.xlane.f32.xlu0 %v270
        %v301 = vpop.xlane.xlu0 %300
        %302 = vadd.xlane.f32.xlu0 %v273
        %v303 = vpop.xlane.xlu0 %302
        %304 = vadd.xlane.f32.xlu0 %v278
        %v305 = vpop.xlane.xlu0 %304
        %306 = vadd.xlane.f32.xlu0 %v281
        %v307 = vpop.xlane.xlu0 %306
        %308 = vadd.xlane.f32.xlu0 %v286
        %v309 = vpop.xlane.xlu0 %308
        %310 = vadd.xlane.f32.xlu0 %v289
        %v311 = vpop.xlane.xlu0 %310
        %312 = vadd.xlane.f32.xlu0 %v294
        %v313 = vpop.xlane.xlu0 %312
        %314 = vadd.xlane.f32.xlu0 %v297
        %v315 = vpop.xlane.xlu0 %314
        %v316 = vmul.f32 %v301, 0.0078125
        %v317 = vmul.f32 %v303, 0.0078125
        %v318 = vmul.f32 %v305, 0.0078125
        %v319 = vmul.f32 %v307, 0.0078125
        %v320 = vmul.f32 %v309, 0.0078125
        %v321 = vmul.f32 %v311, 0.0078125
        %v322 = vmul.f32 %v313, 0.0078125
        %v323 = vmul.f32 %v315, 0.0078125
        %v324 = vsub.f32 %v270, %v316
        %v325 = vsub.f32 %v273, %v317
        %v326 = vsub.f32 %v278, %v318
        %v327 = vsub.f32 %v281, %v319
        %v328 = vsub.f32 %v286, %v320
        %v329 = vsub.f32 %v289, %v321
        %v330 = vsub.f32 %v294, %v322
        %v331 = vsub.f32 %v297, %v323
        %v332 = vmul.f32 %v324, %v324
        %v333 = vmul.f32 %v325, %v325
        %v334 = vmul.f32 %v326, %v326
        %v335 = vmul.f32 %v327, %v327
        %v336 = vmul.f32 %v328, %v328
        %v337 = vmul.f32 %v329, %v329
        %v338 = vmul.f32 %v330, %v330
        %v339 = vmul.f32 %v331, %v331
        %340 = vadd.xlane.f32.xlu0 %v332
        %v341 = vpop.xlane.xlu0 %340
        %342 = vadd.xlane.f32.xlu0 %v333
        %v343 = vpop.xlane.xlu0 %342
        %344 = vadd.xlane.f32.xlu0 %v334
        %v345 = vpop.xlane.xlu0 %344
        %346 = vadd.xlane.f32.xlu0 %v335
        %v347 = vpop.xlane.xlu0 %346
        %348 = vadd.xlane.f32.xlu0 %v336
        %v349 = vpop.xlane.xlu0 %348
        %350 = vadd.xlane.f32.xlu0 %v337
        %v351 = vpop.xlane.xlu0 %350
        %352 = vadd.xlane.f32.xlu0 %v338
        %v353 = vpop.xlane.xlu0 %352
        %354 = vadd.xlane.f32.xlu0 %v339
        %v355 = vpop.xlane.xlu0 %354
        %v356 = vmul.f32 %v341, 0.0078125
        %v357 = vmul.f32 %v343, 0.0078125
        %v358 = vmul.f32 %v345, 0.0078125
        %v359 = vmul.f32 %v347, 0.0078125
        %v360 = vmul.f32 %v349, 0.0078125
        %v361 = vmul.f32 %v351, 0.0078125
        %v362 = vmul.f32 %v353, 0.0078125
        %v363 = vmul.f32 %v355, 0.0078125
        %v364 = vadd.f32 %v356, 1e-05
        %v365 = vadd.f32 %v357, 1e-05
        %v366 = vadd.f32 %v358, 1e-05
        %v367 = vadd.f32 %v359, 1e-05
        %v368 = vadd.f32 %v360, 1e-05
        %v369 = vadd.f32 %v361, 1e-05
        %v370 = vadd.f32 %v362, 1e-05
        %v371 = vadd.f32 %v363, 1e-05
        %v372 = vrsqrt.pop %v364
        %v373 = vrsqrt.pop %v365
        %v374 = vrsqrt.pop %v366
        %v375 = vrsqrt.pop %v367
        %v376 = vrsqrt.pop %v368
        %v377 = vrsqrt.pop %v369
        %v378 = vrsqrt.pop %v370
        %v379 = vrsqrt.pop %v371
        %v380 = vmul.f32 %v324, %v372
        %v381 = vmul.f32 %v325, %v373
        %v382 = vmul.f32 %v326, %v374
        %v383 = vmul.f32 %v327, %v375
        %v384 = vmul.f32 %v328, %v376
        %v385 = vmul.f32 %v329, %v377
        %v386 = vmul.f32 %v330, %v378
        %v387 = vmul.f32 %v331, %v379
        %v388 = vld [vmem:[%s2 + $0x1] sm:$0x1]
        %v389 = vlaneseq
        %v390 = vshrl.u32 %v389, 7
        %v391 = vsub.s32 0, %v390
        %v392 = vrot.slane %v388, %v391
        %v393 = vmul.f32 %v380, %v392
        %v394 = vmul.f32 %v381, %v392
        %v395 = vmul.f32 %v382, %v392
        %v396 = vmul.f32 %v383, %v392
        %v397 = vmul.f32 %v384, %v392
        %v398 = vmul.f32 %v385, %v392
        %v399 = vmul.f32 %v386, %v392
        %v400 = vmul.f32 %v387, %v392
        %v401 = vld [vmem:[%s2 + $0x2] sm:$0x1]
        %v402 = vlaneseq
        %v403 = vshrl.u32 %v402, 7
        %v404 = vsub.s32 0, %v403
        %v405 = vrot.slane %v401, %v404
        %v406 = vadd.f32 %v393, %v405
        %v407 = vadd.f32 %v394, %v405
        %v408 = vadd.f32 %v395, %v405
        %v409 = vadd.f32 %v396, %v405
        %v410 = vadd.f32 %v397, %v405
        %v411 = vadd.f32 %v398, %v405
        %v412 = vadd.f32 %v399, %v405
        %v413 = vadd.f32 %v400, %v405
        %v414 = vpack.c.bf16 %v407, %v406
        %v415 = vpack.c.bf16 %v409, %v408
        %v416 = vpack.c.bf16 %v411, %v410
        %v417 = vpack.c.bf16 %v413, %v412
        %v422 = vunpack.c.l.b16 %v414
        %v423 = vunpack.c.h.b16 %v414
        %v424 = vunpack.c.l.b16 %v415
        %v425 = vunpack.c.h.b16 %v415
        %v426 = vunpack.c.l.b16 %v416
        %v427 = vunpack.c.h.b16 %v416
        %v428 = vunpack.c.l.b16 %v417
        %v429 = vunpack.c.h.b16 %v417
        %v430 = vpack.c.b16 %v422, %v422
        %v431 = vpack.c.b16 %v423, %v423
        %v432 = vpack.c.b16 %v424, %v424
        %v433 = vpack.c.b16 %v425, %v425
        %v434 = vpack.c.b16 %v426, %v426
        %v435 = vpack.c.b16 %v427, %v427
        %v436 = vpack.c.b16 %v428, %v428
        %v437 = vpack.c.b16 %v429, %v429
        %446 = vst [vmem:[%s164] sm:$0xf] %v430
        %447 = vst [vmem:[%s164 + $0x4] sm:$0xf] %v431
        %448 = vst [vmem:[%s164 + $0x8] sm:$0xf] %v432
        %449 = vst [vmem:[%s164 + $0xc] sm:$0xf] %v433
        %450 = vst [vmem:[%s164 + $0x10] sm:$0xf] %v434
        %451 = vst [vmem:[%s164 + $0x14] sm:$0xf] %v435
        %452 = vst [vmem:[%s164 + $0x18] sm:$0xf] %v436
        %453 = vst [vmem:[%s164 + $0x1c] sm:$0xf] %v437
        %s454 = sand.u32 %s93, 1
        %s455 = scalar_lea.sflag [#allocation3], %s454
        %s456 = sand.u32 %s93, 1
        %s457 = smul.addr %s456, 32
        %s458 = scalar_lea.vmem [#allocation2], %s457
        // Predicated region
        $region33: #{tpu_custom_call.1} parent=31 // pred_check
          %p459 = pneg %p103
        $region34: #{tpu_custom_call.1} parent=31 // pred_check_branch
          %461 = sbr.rel (%p459) target = $region36
        $region35: #{tpu_custom_call.1} parent=31 // pred_region
          %s462 = smul.u32 8, %s17
          %s464 = ssub.s32 512, 512
          %465 = vsyncadd %s455, %s464
          %s466 = smul.addr %s462, 64
          %s467 = scalar_lea.hbm %s3, %s466
          %s468 = sshll.u32 %s458, 4
          %s469 = int_to_ptr.vmem [resolvable:$true] %s468
          %474 = dma.vmem_to_hbm [thread:$0]  %s469, 512, %s467, %s455, 64, 64, 4
        $region36: #{tpu_custom_call.1} parent=31 // pred_fallthru
          _
      $region32: #{tpu_custom_call.1} parent=5 // pred_fallthru
        _
      %p475 = scmp.le.s32.totalorder 2, %s12
      // Predicated region
      $region37: #{tpu_custom_call.1} parent=5 // pred_check
        %p476 = pneg %p475
      $region38: #{tpu_custom_call.1} parent=5 // pred_check_branch
        %478 = sbr.rel (%p476) target = $region40
      $region39: #{tpu_custom_call.1} parent=5 // pred_region
        %s479 = ssub.s32 %s12, 2
        // Predicated region
        $region41: #{tpu_custom_call.1} parent=39 // pred_check
          %p480 = pneg %p109
        $region42: #{tpu_custom_call.1} parent=39 // pred_check_branch
          %482 = sbr.rel (%p480) target = $region44
        $region43: #{tpu_custom_call.1} parent=39 // pred_region
          %s483 = sand.u32 %s94, 1
          %s484 = scalar_lea.sflag [#allocation3], %s483
          %s485 = sand.u32 %s94, 1
          %s486 = smul.addr %s485, 32
          %s487 = scalar_lea.vmem [#allocation2], %s486
          %488 = dma.done %s484, 512
        $region44: #{tpu_custom_call.1} parent=39 // pred_fallthru
          _
      $region40: #{tpu_custom_call.1} parent=5 // pred_fallthru
        _
    $region6: #{tpu_custom_call.1} parent=1 // loop_footer
      %s16 = sadd.s32 1, %s12
    $region7: #{tpu_custom_call.1} parent=1 // loop_footer_branch
      %11 = sbr.rel target = $region3
    $region8: #{tpu_custom_call.1} parent=1 // loop_exit
      _
    %489 = vsyncpa [#allocation3], 1
    %s490 = scalar_lea.sflag [#allocation3], 1
    %491 = vsyncpa %s490, 1

</llo_original>
